<compile_context>
chip_gen: v5e
topology: v5e:2x2
jax: 0.10.0
libtpu: 0.0.40
codegen_flags: <defaults>
</compile_context>

<pallas_src>
import functools
import math

import jax
import jax.numpy as jnp
from jax.experimental import pallas as pl
from jax.experimental.pallas import tpu as pltpu


D_MODEL = 32          # output_dim of FrameEmbedding
PACK = 4              # batch rows packed per 128-lane vreg row (4 * 32 = 128)
LANES = PACK * D_MODEL


def _round_up(x, m):
    return (x + m - 1) // m * m


def _device_kind():
    try:
        return jax.devices()[0].device_kind.lower()
    except Exception:  # pragma: no cover - no accelerator at import time
        return ""


_KIND = _device_kind()
_IS_V5 = "v5" in _KIND                       # no bf16 VPU path on v5e
_MULTI_CORE = ("v7" in _KIND) or ("7x" in _KIND)   # 2 TensorCores per chip


def frame_embedding_kernel(idx_ref, seldiv_ref, phase_ref, w1_ref, w2_ref, out_ref,
                           *, relu_bf16=True):
    """Fused sinusoidal-PE + 2-layer MLP on a lane-packed batch tile.

    idx_ref:    (R, 4)    int32   4 frame indices per packed row (R = TILE_B/4)
    seldiv_ref: (4, 128)  f32     row k = div_term (repeated per feature pair) on
                                  lanes [32k, 32k+32), zeros elsewhere
    phase_ref:  (1, 128)  f32     0 on even features, pi/2 on odd (cos = sin(x+pi/2))
    w1_ref:     (128,128) bf16    block-diagonal (4 copies) of W1, (in, out) layout
    w2_ref:     (128,128) bf16    block-diagonal (4 copies) of W2, (in, out) layout
    out_ref:    (R, 128)  f32/bf16  packed output; bytes == (TILE_B, 32) row-major
    """
    pos4 = idx_ref[...].astype(jnp.float32)          # (R, 4); exact for frame counts
    seldiv = seldiv_ref[...]                         # (4, 128)

    # Expand each packed position across its 32-lane feature slot while applying
    # div_term.  Masks are 0/1-scaled and disjoint, so the sum is exact f32.
    # (VALU is the binding slot; this is 7 ops/elem vs ~20 for the sin polynomial.)
    ang = pos4[:, 0:1] * seldiv[0:1, :]
    for k in range(1, PACK):
        ang = ang + pos4[:, k:k + 1] * seldiv[k:k + 1, :]
    ang = ang + phase_ref[...]                       # +pi/2 on odd lanes -> cos

    pe = jnp.sin(ang).astype(jnp.bfloat16)           # (R, 128), single sin pass

    h = jnp.dot(pe, w1_ref[...], preferred_element_type=jnp.float32)
    if relu_bf16:
        # v6e/v7x: bf16 VALU packs 2 elems/lane -> cheaper ReLU on the saturated slot.
        h = jnp.maximum(h.astype(jnp.bfloat16), 0.0)
    else:
        # v5e has no bf16 VPU -> keep the max in f32, then cast for the MXU.
        h = jnp.maximum(h, 0.0).astype(jnp.bfloat16)
    out = jnp.dot(h, w2_ref[...], preferred_element_type=jnp.float32)
    out_ref[...] = out.astype(out_ref.dtype)


def frame_embedding_forward(indices, seldiv, phase, w1p, w2p, tile_b=16384,
                            out_dtype=jnp.float32, relu_bf16=None):
    """indices: (B, 1) or (B,) integer frame ids.  Returns (B, 1, D_MODEL) out_dtype."""
    if relu_bf16 is None:
        relu_bf16 = not _IS_V5

    B = indices.shape[0]
    B32 = _round_up(max(B, 1), 32)

    # Tile sizing: big tiles amortize the ~0.35us/step pipeline overhead; clamp so
    # double-buffered tiles stay small even on v5e's 16 MiB default scoped VMEM.
    tile_b = _round_up(max(32, min(int(tile_b), 32768, B32)), 32)
    # v7x: make sure the "parallel" batch grid has >= 2 steps so both TCs get work.
    if _MULTI_CORE and B32 >= 64 and tile_b >= B32:
        tile_b = _round_up((B32 + 1) // 2, 32)
    Bp = _round_up(B, tile_b)

    idx = indices.reshape(-1).astype(jnp.int32)
    if Bp != B:
        idx = jnp.pad(idx, (0, Bp - B))              # tail padding, sliced off below
    idx4 = idx.reshape(Bp // PACK, PACK)             # (Bp/4, 4)

    R = tile_b // PACK
    grid = (Bp // tile_b,)

    out_itemsize = jnp.dtype(out_dtype).itemsize
    tile_vmem = 2 * (R * LANES * out_itemsize + R * PACK * 4)            # dbl-buffered I/O
    const_vmem = 2 * (2 * LANES * LANES * 2 + (PACK + 1) * LANES * 4)    # resident consts
    vmem_limit = int(min(max(tile_vmem + const_vmem + (4 << 20), 16 << 20), 64 << 20))

    kernel = functools.partial(frame_embedding_kernel, relu_bf16=bool(relu_bf16))

    out_packed = pl.pallas_call(
        kernel,
        out_shape=jax.ShapeDtypeStruct((Bp // PACK, LANES), out_dtype),
        grid=grid,
        in_specs=[
            pl.BlockSpec((R, PACK), lambda i: (i, 0)),        # packed indices
            pl.BlockSpec((PACK, LANES), lambda i: (0, 0)),    # div masks (resident)
            pl.BlockSpec((1, LANES), lambda i: (0, 0)),       # phase (resident)
            pl.BlockSpec((LANES, LANES), lambda i: (0, 0)),   # W1 block-diag (resident)
            pl.BlockSpec((LANES, LANES), lambda i: (0, 0)),   # W2 block-diag (resident)
        ],
        out_specs=pl.BlockSpec((R, LANES), lambda i: (i, 0)),
        compiler_params=pltpu.CompilerParams(
            dimension_semantics=("parallel",),
            vmem_limit_bytes=vmem_limit,
        ),
        cost_estimate=pl.CostEstimate(
            # Real (block-diagonal, K=N=128) matmul flops + elementwise work.
            flops=int(Bp) * (16 * D_MODEL * D_MODEL + 12 * D_MODEL),
            transcendentals=int(Bp) * D_MODEL,
            bytes_accessed=int(Bp) * (4 + out_itemsize * D_MODEL)
            + 2 * LANES * LANES * 2 + (PACK + 1) * LANES * 4,
        ),
    )(idx4, seldiv, phase, w1p, w2p)

    # (Bp/4, 128) is byte-identical to (Bp, 32) row-major -> free reshape.
    out = out_packed.reshape(Bp, D_MODEL)[:B]
    return out[:, None, :]                            # matches pe[:, None, :] path


# ----------------------------------------------------------------------------
# Optional fast path: bounded frame counts (typical talking-head videos).
# Precompute T[f] = MLP(PE(f)) once; lookup is then a pure gather (output-BW
# bound), removing the sin polynomial and both matmuls from the hot path.
# ----------------------------------------------------------------------------
def precompute_frame_table(n_frames, packed_params, out_dtype=jnp.float32):
    idx = jnp.arange(n_frames, dtype=jnp.int32)[:, None]
    return frame_embedding_forward(idx, *packed_params, out_dtype=out_dtype)[:, 0, :]


def frame_embedding_lookup(indices, table):
    flat = indices.reshape(-1).astype(jnp.int32)
    return jnp.take(table, flat, axis=0)[:, None, :]


def make_params(key):
    """Deterministic synthetic parameters (shapes from FrameEmbedding.__init__)."""
    k1, k2 = jax.random.split(key, 2)

    # div_term = exp(arange(0, D, 2) * (-ln(10000)/D))  -> (D/2,)
    div_term = jnp.exp(
        jnp.arange(0, D_MODEL, 2, dtype=jnp.float32) * (-math.log(10000.0) / D_MODEL)
    )
    div_full = jnp.repeat(div_term, 2)                                   # (32,)
    phase_full = jnp.tile(jnp.array([0.0, math.pi / 2.0], jnp.float32),
                          D_MODEL // 2)                                  # (32,)

    # Packed (lane-dense) constants: 4 feature slots of 32 lanes per 128-lane row.
    div_tiled = jnp.tile(div_full, PACK)                                 # (128,)
    phase = jnp.tile(phase_full, PACK).reshape(1, LANES)                 # (1, 128)
    slot = jnp.arange(LANES) // D_MODEL                                  # (128,)
    seldiv = jnp.where(slot[None, :] == jnp.arange(PACK)[:, None],
                       div_tiled[None, :], 0.0).astype(jnp.float32)      # (4, 128)

    # Linear weights, stored transposed as (in, out).  Kaiming-ish scale.
    scale = 1.0 / math.sqrt(D_MODEL)
    w1 = jax.random.uniform(k1, (D_MODEL, D_MODEL), jnp.float32, -scale, scale)
    w2 = jax.random.uniform(k2, (D_MODEL, D_MODEL), jnp.float32, -scale, scale)

    # 128x128 block-diagonal replicas (4 copies), bf16 for MXU-native matmuls.
    eye4 = jnp.eye(PACK, dtype=jnp.float32)
    w1p = jnp.kron(eye4, w1).astype(jnp.bfloat16)
    w2p = jnp.kron(eye4, w2).astype(jnp.bfloat16)

    return (div_term, w1, w2), (seldiv, phase, w1p, w2p)


def reference_forward(indices, div_term, w1, w2):
    """Plain-JAX replica of the PyTorch forward (f32 everywhere), for validation."""
    B = indices.shape[0]
    pos = indices.astype(jnp.float32).reshape(B, 1)
    pe = jnp.zeros((B, D_MODEL), jnp.float32)
    pe = pe.at[:, 0::2].set(jnp.sin(pos * div_term))
    pe = pe.at[:, 1::2].set(jnp.cos(pos * div_term))
    emb = pe[:, None, :]
    h = jnp.maximum(emb @ w1, 0.0)
    return h @ w2


if __name__ == "__main__":
    key = jax.random.PRNGKey(0)
    kp, kx = jax.random.split(key)

    (div_term, w1, w2), packed = make_params(kp)

    # Small demo batch of frame indices, shape (B, 1).
    B = 8
    x = jax.random.randint(kx, (B, 1), 0, 1000, dtype=jnp.int32)

    out = jax.block_until_ready(frame_embedding_forward(x, *packed))
    ref = reference_forward(x, div_term, w1, w2)
    assert out.shape == (B, 1, D_MODEL), out.shape
    # bf16 weights/activations -> ~1e-2-level differences vs the f32 reference.
    assert jnp.allclose(out, ref, atol=5e-2, rtol=5e-2), float(
        jnp.max(jnp.abs(out - ref)))

    # Second check: multiple grid steps + tail padding (B=100, TILE_B=32).
    B2 = 100
    x2 = jax.random.randint(jax.random.PRNGKey(1), (B2, 1), 0, 1000, dtype=jnp.int32)
    out2 = jax.block_until_ready(frame_embedding_forward(x2, *packed, tile_b=32))
    ref2 = reference_forward(x2, div_term, w1, w2)
    assert out2.shape == (B2, 1, D_MODEL), out2.shape
    assert jnp.allclose(out2, ref2, atol=5e-2, rtol=5e-2), float(
        jnp.max(jnp.abs(out2 - ref2)))

    # Third check: bf16 output path (halves HBM writeback; useful on v5e).
    out2b = jax.block_until_ready(
        frame_embedding_forward(x2, *packed, tile_b=32, out_dtype=jnp.bfloat16))
    assert out2b.dtype == jnp.bfloat16
    assert jnp.allclose(out2b.astype(jnp.float32), ref2, atol=5e-2, rtol=5e-2), float(
        jnp.max(jnp.abs(out2b.astype(jnp.float32) - ref2)))

    # Fourth check: precomputed-table + gather fast path (bounded frame indices).
    table = jax.block_until_ready(precompute_frame_table(1000, packed))
    out3 = jax.block_until_ready(frame_embedding_lookup(x, table))
    assert out3.shape == (B, 1, D_MODEL), out3.shape
    assert jnp.allclose(out3, ref, atol=5e-2, rtol=5e-2), float(
        jnp.max(jnp.abs(out3 - ref)))

    print("KERNEL_OK")
</pallas_src>

<mosaic_0001>
module attributes {stable_mosaic.version = 11 : i64} {
  func.func @frame_embedding_kernel(%arg0: i32, %arg1: memref<8x4xi32, #tpu.memory_space<vmem>>, %arg2: memref<4x128xf32, #tpu.memory_space<vmem>>, %arg3: memref<1x128xf32, #tpu.memory_space<vmem>>, %arg4: memref<128x128xbf16, #tpu.memory_space<vmem>>, %arg5: memref<128x128xbf16, #tpu.memory_space<vmem>>, %arg6: memref<8x128xf32, #tpu.memory_space<vmem>>) attributes {dimension_semantics = [#tpu.dimension_semantics<parallel>], iteration_bounds = array<i64: 1>, scalar_prefetch = 0 : i64, scratch_operands = 0 : i64, tpu.core_type = #tpu.core_type<tc>, window_params = [{transform_indices = @transform_0, window_bounds = array<i64: 8, 4>}, {pipeline_mode = #tpu.pipeline_mode<synchronous>, transform_indices = @transform_1, window_bounds = array<i64: 4, 128>}, {pipeline_mode = #tpu.pipeline_mode<synchronous>, transform_indices = @transform_2, window_bounds = array<i64: 1, 128>}, {pipeline_mode = #tpu.pipeline_mode<synchronous>, transform_indices = @transform_3, window_bounds = array<i64: 128, 128>}, {pipeline_mode = #tpu.pipeline_mode<synchronous>, transform_indices = @transform_4, window_bounds = array<i64: 128, 128>}, {transform_indices = @transform_5, window_bounds = array<i64: 8, 128>}]} {
    %c0 = arith.constant 0 : index
    %c0_0 = arith.constant 0 : index
    %0 = vector.load %arg1[%c0, %c0_0] : memref<8x4xi32, #tpu.memory_space<vmem>>, vector<8x4xi32>
    %1 = arith.sitofp %0 : vector<8x4xi32> to vector<8x4xf32>
    %c0_1 = arith.constant 0 : index
    %c0_2 = arith.constant 0 : index
    %2 = vector.load %arg2[%c0_1, %c0_2] : memref<4x128xf32, #tpu.memory_space<vmem>>, vector<4x128xf32>
    %3 = vector.extract_strided_slice %1 {offsets = [0, 0], sizes = [8, 1], strides = [1, 1]} : vector<8x4xf32> to vector<8x1xf32>
    %4 = vector.extract_strided_slice %2 {offsets = [0, 0], sizes = [1, 128], strides = [1, 1]} : vector<4x128xf32> to vector<1x128xf32>
    %5 = vector.broadcast %3 : vector<8x1xf32> to vector<8x128xf32>
    %6 = vector.broadcast %4 : vector<1x128xf32> to vector<8x128xf32>
    %7 = arith.mulf %5, %6 : vector<8x128xf32>
    %8 = vector.extract_strided_slice %1 {offsets = [0, 1], sizes = [8, 1], strides = [1, 1]} : vector<8x4xf32> to vector<8x1xf32>
    %9 = vector.extract_strided_slice %2 {offsets = [1, 0], sizes = [1, 128], strides = [1, 1]} : vector<4x128xf32> to vector<1x128xf32>
    %10 = vector.broadcast %8 : vector<8x1xf32> to vector<8x128xf32>
    %11 = vector.broadcast %9 : vector<1x128xf32> to vector<8x128xf32>
    %12 = arith.mulf %10, %11 : vector<8x128xf32>
    %13 = arith.addf %7, %12 : vector<8x128xf32>
    %14 = vector.extract_strided_slice %1 {offsets = [0, 2], sizes = [8, 1], strides = [1, 1]} : vector<8x4xf32> to vector<8x1xf32>
    %15 = vector.extract_strided_slice %2 {offsets = [2, 0], sizes = [1, 128], strides = [1, 1]} : vector<4x128xf32> to vector<1x128xf32>
    %16 = vector.broadcast %14 : vector<8x1xf32> to vector<8x128xf32>
    %17 = vector.broadcast %15 : vector<1x128xf32> to vector<8x128xf32>
    %18 = arith.mulf %16, %17 : vector<8x128xf32>
    %19 = arith.addf %13, %18 : vector<8x128xf32>
    %20 = vector.extract_strided_slice %1 {offsets = [0, 3], sizes = [8, 1], strides = [1, 1]} : vector<8x4xf32> to vector<8x1xf32>
    %21 = vector.extract_strided_slice %2 {offsets = [3, 0], sizes = [1, 128], strides = [1, 1]} : vector<4x128xf32> to vector<1x128xf32>
    %22 = vector.broadcast %20 : vector<8x1xf32> to vector<8x128xf32>
    %23 = vector.broadcast %21 : vector<1x128xf32> to vector<8x128xf32>
    %24 = arith.mulf %22, %23 : vector<8x128xf32>
    %25 = arith.addf %19, %24 : vector<8x128xf32>
    %c0_3 = arith.constant 0 : index
    %c0_4 = arith.constant 0 : index
    %26 = vector.load %arg3[%c0_3, %c0_4] : memref<1x128xf32, #tpu.memory_space<vmem>>, vector<1x128xf32>
    %27 = vector.broadcast %26 : vector<1x128xf32> to vector<8x128xf32>
    %28 = arith.addf %25, %27 : vector<8x128xf32>
    %29 = math.sin %28 : vector<8x128xf32>
    %30 = arith.truncf %29 : vector<8x128xf32> to vector<8x128xbf16>
    %c0_5 = arith.constant 0 : index
    %c0_6 = arith.constant 0 : index
    %31 = vector.load %arg4[%c0_5, %c0_6] : memref<128x128xbf16, #tpu.memory_space<vmem>>, vector<128x128xbf16>
    %cst = arith.constant dense<0.000000e+00> : vector<8x128xf32>
    %32 = tpu.matmul %30, %31, %cst {dimension_numbers = #tpu.dot_dimension_numbers<[1], [0], [0], [1], [0, 0, 1, 1], [], []>} : vector<8x128xbf16>, vector<128x128xbf16>, vector<8x128xf32> -> vector<8x128xf32>
    %33 = arith.truncf %32 : vector<8x128xf32> to vector<8x128xbf16>
    %cst_7 = arith.constant 0.000000e+00 : bf16
    %34 = vector.broadcast %cst_7 : bf16 to vector<8x128xbf16>
    %35 = arith.maximumf %33, %34 : vector<8x128xbf16>
    %c0_8 = arith.constant 0 : index
    %c0_9 = arith.constant 0 : index
    %36 = vector.load %arg5[%c0_8, %c0_9] : memref<128x128xbf16, #tpu.memory_space<vmem>>, vector<128x128xbf16>
    %cst_10 = arith.constant dense<0.000000e+00> : vector<8x128xf32>
    %37 = tpu.matmul %35, %36, %cst_10 {dimension_numbers = #tpu.dot_dimension_numbers<[1], [0], [0], [1], [0, 0, 1, 1], [], []>} : vector<8x128xbf16>, vector<128x128xbf16>, vector<8x128xf32> -> vector<8x128xf32>
    %c0_11 = arith.constant 0 : index
    %c0_12 = arith.constant 0 : index
    %38 = vector.load %arg6[%c0_11, %c0_12] : memref<8x128xf32, #tpu.memory_space<vmem>>, vector<8x128xf32>
    tpu.vector_store %arg6[%c0_11, %c0_12], %37 {strides = array<i32>} : memref<8x128xf32, #tpu.memory_space<vmem>>, vector<8x128xf32>,
    return
  }
  func.func @transform_0(%arg0: i32) -> (i32, i32) {
    %c0_i32 = arith.constant 0 : i32
    %c0_i32_0 = arith.constant 0 : i32
    return %arg0, %c0_i32 : i32, i32
  }
  func.func @transform_1(%arg0: i32) -> (i32, i32) {
    %c0_i32 = arith.constant 0 : i32
    %c0_i32_0 = arith.constant 0 : i32
    %c0_i32_1 = arith.constant 0 : i32
    return %c0_i32, %c0_i32_0 : i32, i32
  }
  func.func @transform_2(%arg0: i32) -> (i32, i32) {
    %c0_i32 = arith.constant 0 : i32
    %c0_i32_0 = arith.constant 0 : i32
    %c0_i32_1 = arith.constant 0 : i32
    return %c0_i32, %c0_i32_0 : i32, i32
  }
  func.func @transform_3(%arg0: i32) -> (i32, i32) {
    %c0_i32 = arith.constant 0 : i32
    %c0_i32_0 = arith.constant 0 : i32
    %c0_i32_1 = arith.constant 0 : i32
    return %c0_i32, %c0_i32_0 : i32, i32
  }
  func.func @transform_4(%arg0: i32) -> (i32, i32) {
    %c0_i32 = arith.constant 0 : i32
    %c0_i32_0 = arith.constant 0 : i32
    %c0_i32_1 = arith.constant 0 : i32
    return %c0_i32, %c0_i32_0 : i32, i32
  }
  func.func @transform_5(%arg0: i32) -> (i32, i32) {
    %c0_i32 = arith.constant 0 : i32
    %c0_i32_0 = arith.constant 0 : i32
    return %arg0, %c0_i32 : i32, i32
  }
}

</mosaic_0001>

<llo_original>
// kernel: tpu_custom_call.1
$region0: #{tpu_custom_call.1}
  #allocation0 [shape = 'u32[]', space=smem, size = 0x4, offset = 0x4, fixed_abs, tag = 'smem constant byte address 0x4 - core index']
  #allocation1 [shape = 'u32[72,128]{1,0:T(1,128)}', space=vmem, size = 0x9000, scoped, tag = 'internal scratch']
  %s0 = inlined_call_operand.vmem [shape: s32[8,4], index: 0, kind: input, shape index: {}]
  %s1 = inlined_call_operand.vmem [shape: f32[4,128], index: 1, kind: input, shape index: {}]
  %s2 = inlined_call_operand.vmem [shape: f32[1,128], index: 2, kind: input, shape index: {}]
  %s3 = inlined_call_operand.hbm [shape: bf16[128,128], index: 3, kind: input, shape index: {}]
  %s4 = inlined_call_operand.hbm [shape: bf16[128,128], index: 4, kind: input, shape index: {}]
  %s5 = inlined_call_operand.hbm [shape: f32[8,128], index: 5, kind: output, shape index: {}]
  %s6 = sld [smem:[#allocation0]]
  $region38: #{tpu_custom_call.1} parent=0
    _
  %s8 = ssub.s32 1, %s6
  %s9 = scalar_select 0, %s8, %s6
  $region1: #{tpu_custom_call.1} parent=0
    #allocation2 [shape = 'u8[32768]{0}', space=vmem, size = 0x8000, scoped, tag = 'input window, operand 3, single buffered']
    #allocation3 [shape = 's32[1]{0}', space=sflag, size = 0x4, scoped, tag = 'scoped memory for tpu_custom_call.1']
    #allocation4 [shape = 's32[1]{0}', space=sflag, size = 0x4, scoped, tag = 'scoped memory for tpu_custom_call.1']
    #allocation5 [shape = 'u8[32768]{0}', space=vmem, size = 0x8000, scoped, tag = 'input window, operand 4, single buffered']
    #allocation6 [shape = 's32[1]{0}', space=sflag, size = 0x4, scoped, tag = 'scoped memory for tpu_custom_call.1']
    #allocation7 [shape = 'u8[4096]{0}', space=vmem, size = 0x1000, scoped, tag = 'output window, operand 0, single buffered']
    %10 = vsyncpa [#allocation3], 0
    %11 = vsyncpa [#allocation6], 0
    %12 = vsyncpa [#allocation4], 0
    // Predicated region
    $region2: #{tpu_custom_call.1} parent=1 // pred_check
      _
    $region3: #{tpu_custom_call.1} parent=1 // pred_check_branch
      %14 = sbr.rel (0) target = $region5
    $region4: #{tpu_custom_call.1} parent=1 // pred_region
      _
    $region5: #{tpu_custom_call.1} parent=1 // pred_fallthru
      _
    // Predicated region
    $region6: #{tpu_custom_call.1} parent=1 // pred_check
      _
    $region7: #{tpu_custom_call.1} parent=1 // pred_check_branch
      %16 = sbr.rel (0) target = $region9
    $region8: #{tpu_custom_call.1} parent=1 // pred_region
      _
    $region9: #{tpu_custom_call.1} parent=1 // pred_fallthru
      _
    // Predicated region
    $region10: #{tpu_custom_call.1} parent=1 // pred_check
      _
    $region11: #{tpu_custom_call.1} parent=1 // pred_check_branch
      %18 = sbr.rel (0) target = $region13
    $region12: #{tpu_custom_call.1} parent=1 // pred_region
      _
    $region13: #{tpu_custom_call.1} parent=1 // pred_fallthru
      _
    // Predicated region
    $region14: #{tpu_custom_call.1} parent=1 // pred_check
      _
    $region15: #{tpu_custom_call.1} parent=1 // pred_check_branch
      %20 = sbr.rel (0) target = $region17
    $region16: #{tpu_custom_call.1} parent=1 // pred_region
      %22 = vsyncadd [#allocation3], 0
      %s23 = sshll.u32 %s3, 4
      %s24 = int_to_ptr.hbm [resolvable:$true] %s23
      %s25 = sshll.u32 [#allocation2], 4
      %s26 = int_to_ptr.vmem [resolvable:$true] %s25
      %31 = dma.hbm_to_vmem [thread:$0]  %s24, 1024, %s26, [#allocation3], 64, 64, 4
    $region17: #{tpu_custom_call.1} parent=1 // pred_fallthru
      _
    // Predicated region
    $region18: #{tpu_custom_call.1} parent=1 // pred_check
      _
    $region19: #{tpu_custom_call.1} parent=1 // pred_check_branch
      %33 = sbr.rel (0) target = $region21
    $region20: #{tpu_custom_call.1} parent=1 // pred_region
      %35 = vsyncadd [#allocation6], 0
      %s36 = sshll.u32 %s4, 4
      %s37 = int_to_ptr.hbm [resolvable:$true] %s36
      %s38 = sshll.u32 [#allocation5], 4
      %s39 = int_to_ptr.vmem [resolvable:$true] %s38
      %44 = dma.hbm_to_vmem [thread:$0]  %s37, 1024, %s39, [#allocation6], 64, 64, 4
    $region21: #{tpu_custom_call.1} parent=1 // pred_fallthru
      _
    // Predicated region
    $region22: #{tpu_custom_call.1} parent=1 // pred_check
      _
    $region23: #{tpu_custom_call.1} parent=1 // pred_check_branch
      %46 = sbr.rel (0) target = $region25
    $region24: #{tpu_custom_call.1} parent=1 // pred_region
      %48 = dma.done [#allocation3], 1024
    $region25: #{tpu_custom_call.1} parent=1 // pred_fallthru
      _
    // Predicated region
    $region26: #{tpu_custom_call.1} parent=1 // pred_check
      _
    $region27: #{tpu_custom_call.1} parent=1 // pred_check_branch
      %50 = sbr.rel (0) target = $region29
    $region28: #{tpu_custom_call.1} parent=1 // pred_region
      %52 = dma.done [#allocation6], 1024
    $region29: #{tpu_custom_call.1} parent=1 // pred_fallthru
      _
    %v53 = vld [vmem:[%s0] sm:$0xff]
    %v54 = vcvt.s32.f32 %v53
    %v55 = vld [vmem:[%s1] sm:$0xf]
    %57 = vset.pattern.permute.xlu0 0
    %58 = vperm.xlu0 %57, %v54
    %v59 = vpop.permute.xlu0 %58
    %v61 = vperm.slane %v55, 0
    %v62 = vmul.f32 %v59, %v61
    %63 = vset.pattern.permute.xlu0 1
    %64 = vperm.xlu0 %63, %v54
    %v65 = vpop.permute.xlu0 %64
    %v67 = vperm.slane %v55, 1
    %v68 = vmul.f32 %v65, %v67
    %v69 = vadd.f32 %v62, %v68
    %70 = vset.pattern.permute.xlu0 2
    %71 = vperm.xlu0 %70, %v54
    %v72 = vpop.permute.xlu0 %71
    %v74 = vperm.slane %v55, 2
    %v75 = vmul.f32 %v72, %v74
    %v76 = vadd.f32 %v69, %v75
    %77 = vset.pattern.permute.xlu0 3
    %78 = vperm.xlu0 %77, %v54
    %v79 = vpop.permute.xlu0 %78
    %v81 = vperm.slane %v55, 3
    %v82 = vmul.f32 %v79, %v81
    %v83 = vadd.f32 %v76, %v82
    %v84 = vld [vmem:[%s2] sm:$0x1]
    %v86 = vperm.slane %v84, 0
    %v88 = vadd.f32 %v83, %v86
    %v89 = vand.u32 2147483647, %v88
    %vm90 = vcmp.le.f32.partialorder %v89, 0.7853982
    %vm91 = vcmp.lt.s32.totalorder %v88, 0
    %v92 = vand.u32 %v88, 2139095040
    %v93 = vshrl.u32 %v92, 23
    %v94 = vsub.s32 %v93, 127
    %v95 = vand.u32 2147483647, %v88
    %v96 = vand.u32 %v95, 8388607
    %v97 = vor.u32 %v96, 8388608
    %v98 = vsub.s32 0, %v97
    %v99 = vadd.s32 %v94, 1
    %vm100 = vcmp.gt.s32.totalorder %v99, 0
    %v101 = vsel %vm100, %v99, 0
    %v102 = vshrl.u32 %v101, 5
    %v103 = vand.u32 %v101, 31
    %v104 = vsub.s32 32, %v103
    %v105 = vshrl.u32 683565275, %v104
    %v106 = vshll.u32 683565275, %v103
    %v107 = vshrl.u32 2475754826, %v104
    %v108 = vor.u32 %v106, %v107
    %v109 = vshll.u32 2475754826, %v103
    %v110 = vshrl.u32 2131351028, %v104
    %v111 = vor.u32 %v109, %v110
    %v112 = vshll.u32 2131351028, %v103
    %v113 = vshrl.u32 2102212464, %v104
    %v114 = vor.u32 %v112, %v113
    %v115 = vshll.u32 2102212464, %v103
    %v116 = vshrl.u32 920167782, %v104
    %v117 = vor.u32 %v115, %v116
    %v118 = vshll.u32 920167782, %v103
    %v119 = vshrl.u32 1326507024, %v104
    %v120 = vor.u32 %v118, %v119
    %vm121 = vcmp.lt.s32.totalorder %v102, 1
    %vm122 = vcmp.lt.s32.totalorder %v102, 2
    %vm123 = vcmp.lt.s32.totalorder %v102, 3
    %vm124 = vcmp.lt.s32.totalorder %v102, 4
    %v125 = vsel %vm121, %v105, %v108
    %v126 = vsel %vm124, %v114, 2102212464
    %v127 = vsel %vm123, %v111, %v126
    %v128 = vsel %vm122, %v125, %v127
    %v129 = vsel %vm121, %v108, %v111
    %v130 = vsel %vm124, %v117, 920167782
    %v131 = vsel %vm123, %v114, %v130
    %v132 = vsel %vm122, %v129, %v131
    %v133 = vsel %vm121, %v111, %v114
    %v134 = vsel %vm124, %v120, 1326507024
    %v135 = vsel %vm123, %v117, %v134
    %v136 = vsel %vm122, %v133, %v135
    %v137 = vshll.u32 %v97, 8
    %v138 = vand.u32 %v137, 65535
    %v139 = vshrl.u32 %v137, 16
    %v140 = vand.u32 %v136, 65535
    %v141 = vshrl.u32 %v136, 16
    %v142 = vmul.u32 %v138, %v140
    %v143 = vmul.u32 %v138, %v141
    %v144 = vmul.u32 %v139, %v140
    %v145 = vmul.u32 %v139, %v141
    %v146 = vshll.u32 %v143, 16
    %v147 = vshrl.u32 %v143, 16
    %v148 = vshll.u32 %v144, 16
    %v149 = vshrl.u32 %v144, 16
    %vm150 = vc.u32 %v142, %v146
    %v151 = vsel %vm150, 1, 0
    %v152 = vadd.s32 %v142, %v146
    %v153 = vadd.s32 %v145, %v151
    %vm154 = vc.u32 %v152, %v148
    %v155 = vsel %vm154, 1, 0
    %v156 = vadd.s32 %v152, %v148
    %v157 = vadd.s32 %v153, %v155
    %v158 = vadd.s32 %v157, %v147
    %v159 = vadd.s32 %v158, %v149
    %v160 = vand.u32 %v137, 65535
    %v161 = vshrl.u32 %v137, 16
    %v162 = vand.u32 %v132, 65535
    %v163 = vshrl.u32 %v132, 16
    %v164 = vmul.u32 %v160, %v162
    %v165 = vmul.u32 %v160, %v163
    %v166 = vmul.u32 %v161, %v162
    %v167 = vmul.u32 %v161, %v163
    %v168 = vshll.u32 %v165, 16
    %v169 = vshrl.u32 %v165, 16
    %v170 = vshll.u32 %v166, 16
    %v171 = vshrl.u32 %v166, 16
    %vm172 = vc.u32 %v164, %v168
    %v173 = vsel %vm172, 1, 0
    %v174 = vadd.s32 %v164, %v168
    %v175 = vadd.s32 %v167, %v173
    %vm176 = vc.u32 %v174, %v170
    %v177 = vsel %vm176, 1, 0
    %v178 = vadd.s32 %v174, %v170
    %v179 = vadd.s32 %v175, %v177
    %v180 = vadd.s32 %v179, %v169
    %v181 = vadd.s32 %v180, %v171
    %v182 = vmul.u32 %v137, %v128
    %v183 = vadd.s32 %v159, %v178
    %vm184 = vc.u32 %v159, %v178
    %v185 = vadd.s32 %v181, 1
    %v186 = vsel %vm184, %v185, %v181
    %v187 = vadd.s32 %v182, %v186
    %v188 = vadd.s32 %v187, 536870912
    %v189 = vshrl.u32 %v188, 30
    %v190 = vshll.u32 %v189, 30
    %v191 = vsub.s32 %v187, %v190
    %vm192 = vcmp.lt.s32.totalorder %v191, 0
    %v193 = vsub.s32 0, %v191
    %v194 = vsel %vm192, %v193, %v191
    %v195 = vclz %v194
    %v196 = vsub.s32 %v195, 2
    %vm197 = vcmp.gt.s32.totalorder 0, %v196
    %v198 = vsel %vm197, 0, %v196
    %v199 = vsub.s32 32, %v198
    %v200 = vshll.u32 %v191, %v198
    %v201 = vshrl.u32 %v183, %v199
    %v202 = vor.u32 %v200, %v201
    %v203 = vsub.s32 4294967266, %v198
    %v204 = vadd.s32 %v203, 127
    %v205 = vshll.u32 %v204, 23
    %v206 = vor.u32 4788187, %v205
    %v207 = vand.u32 2147483647, %v206
    %v209 = vcvt.s32.f32 %v202
    %v210 = vmul.f32 %v209, %v207
    %v211 = vxor.u32 %v210, 2147483648
    %v212 = vsel %vm91, %v211, %v210
    %v213 = vsub.s32 4, %v189
    %v214 = vsel %vm91, %v213, %v189
    %v215 = vsel %vm90, %v88, %v212
    %v216 = vsel %vm90, 0, %v214
    %v217 = vmul.f32 %v215, %v215
    %v218 = vmul.f32 %v217, -0.001358992
    %v219 = vadd.f32 %v218, 0.041655596
    %v220 = vmul.f32 %v217, %v219
    %v221 = vadd.f32 %v220, -0.4999988
    %v222 = vmul.f32 %v217, %v221
    %v223 = vadd.f32 1.0, %v222
    %v224 = vmul.f32 %v215, %v215
    %v225 = vmul.f32 %v224, -0.00019511016
    %v226 = vadd.f32 %v225, 0.008332121
    %v227 = vmul.f32 %v224, %v226
    %v228 = vadd.f32 %v227, -0.16666654
    %v229 = vmul.f32 %v224, %v228
    %v230 = vadd.f32 %v229, 1.0
    %v231 = vmul.f32 %v230, %v215
    %vm232 = vweird.f32 %v88
    %v233 = vadd.s32 %v216, 3
    %v234 = vand.u32 %v233, 3
    %vm235 = vcmp.lt.s32.totalorder %v234, 2
    %vm236 = vcmp.eq.s32.totalorder %v234, 0
    %v237 = vxor.u32 %v231, 2147483648
    %v238 = vsel %vm236, %v223, %v237
    %vm239 = vcmp.eq.s32.totalorder %v234, 2
    %v240 = vxor.u32 %v223, 2147483648
    %v241 = vsel %vm239, %v240, %v231
    %v242 = vsel %vm235, %v238, %v241
    %v243 = vsel %vm232, nan, %v242
    %v244 = vpack.c.bf16 %v243, %v243
    %v245 = vld [vmem:[#allocation2] sm:$0xf]
    %v246 = vld [vmem:[#allocation2 + $0x4] sm:$0xf]
    %v247 = vld [vmem:[#allocation2 + $0x8] sm:$0xf]
    %v248 = vld [vmem:[#allocation2 + $0xc] sm:$0xf]
    %v249 = vld [vmem:[#allocation2 + $0x10] sm:$0xf]
    %v250 = vld [vmem:[#allocation2 + $0x14] sm:$0xf]
    %v251 = vld [vmem:[#allocation2 + $0x18] sm:$0xf]
    %v252 = vld [vmem:[#allocation2 + $0x1c] sm:$0xf]
    %v253 = vld [vmem:[#allocation2 + $0x20] sm:$0xf]
    %v254 = vld [vmem:[#allocation2 + $0x24] sm:$0xf]
    %v255 = vld [vmem:[#allocation2 + $0x28] sm:$0xf]
    %v256 = vld [vmem:[#allocation2 + $0x2c] sm:$0xf]
    %v257 = vld [vmem:[#allocation2 + $0x30] sm:$0xf]
    %v258 = vld [vmem:[#allocation2 + $0x34] sm:$0xf]
    %v259 = vld [vmem:[#allocation2 + $0x38] sm:$0xf]
    %v260 = vld [vmem:[#allocation2 + $0x3c] sm:$0xf]
    %v277 = vunpack.c.l.b16 %v245
    %v278 = vunpack.c.l.b16 %v246
    %v279 = vunpack.c.l.b16 %v247
    %v280 = vunpack.c.l.b16 %v248
    %v281 = vunpack.c.l.b16 %v249
    %v282 = vunpack.c.l.b16 %v250
    %v283 = vunpack.c.l.b16 %v251
    %v284 = vunpack.c.l.b16 %v252
    %v285 = vunpack.c.l.b16 %v253
    %v286 = vunpack.c.l.b16 %v254
    %v287 = vunpack.c.l.b16 %v255
    %v288 = vunpack.c.l.b16 %v256
    %v289 = vunpack.c.l.b16 %v257
    %v290 = vunpack.c.l.b16 %v258
    %v291 = vunpack.c.l.b16 %v259
    %v292 = vunpack.c.l.b16 %v260
    %v293 = vpack.c.b16 %v278, %v277
    %v294 = vpack.c.b16 %v280, %v279
    %v295 = vpack.c.b16 %v282, %v281
    %v296 = vpack.c.b16 %v284, %v283
    %v297 = vpack.c.b16 %v286, %v285
    %v298 = vpack.c.b16 %v288, %v287
    %v299 = vpack.c.b16 %v290, %v289
    %v300 = vpack.c.b16 %v292, %v291
    %309 = vmatpush.bf16.msra.mxu0 %v300
    %310 = vmatpush.bf16.msra.mxu0 %v299
    %311 = vmatpush.bf16.msra.mxu0 %v298
    %312 = vmatpush.bf16.msra.mxu0 %v297
    %313 = vmatpush.bf16.msra.mxu0 %v296
    %314 = vmatpush.bf16.msra.mxu0 %v295
    %315 = vmatpush.bf16.msra.mxu0 %v294
    %316 = vmatpush.bf16.msra.mxu0 %v293
    %317 = vmatmul.bf16.gmra.mxu0 %v244
    %v318 = vpop.f32.mrf.mxu0
    %v319 = vadd.f32 0.0, %v318
    %v320 = vpop.f32.mrf.mxu0
    %321 = vdwg.mxu0
    %v322 = vpack.c.bf16 %v319, %v319
    %v323 = vunpack.c.l.bf16 %v322
    %v324 = vmax.f32 %v323, 0.0
    %v325 = vpack.c.bf16 %v324, %v324
    %v326 = vld [vmem:[#allocation5] sm:$0xf]
    %v327 = vld [vmem:[#allocation5 + $0x4] sm:$0xf]
    %v328 = vld [vmem:[#allocation5 + $0x8] sm:$0xf]
    %v329 = vld [vmem:[#allocation5 + $0xc] sm:$0xf]
    %v330 = vld [vmem:[#allocation5 + $0x10] sm:$0xf]
    %v331 = vld [vmem:[#allocation5 + $0x14] sm:$0xf]
    %v332 = vld [vmem:[#allocation5 + $0x18] sm:$0xf]
    %v333 = vld [vmem:[#allocation5 + $0x1c] sm:$0xf]
    %v334 = vld [vmem:[#allocation5 + $0x20] sm:$0xf]
    %v335 = vld [vmem:[#allocation5 + $0x24] sm:$0xf]
    %v336 = vld [vmem:[#allocation5 + $0x28] sm:$0xf]
    %v337 = vld [vmem:[#allocation5 + $0x2c] sm:$0xf]
    %v338 = vld [vmem:[#allocation5 + $0x30] sm:$0xf]
    %v339 = vld [vmem:[#allocation5 + $0x34] sm:$0xf]
    %v340 = vld [vmem:[#allocation5 + $0x38] sm:$0xf]
    %v341 = vld [vmem:[#allocation5 + $0x3c] sm:$0xf]
    %v358 = vunpack.c.l.b16 %v326
    %v359 = vunpack.c.l.b16 %v327
    %v360 = vunpack.c.l.b16 %v328
    %v361 = vunpack.c.l.b16 %v329
    %v362 = vunpack.c.l.b16 %v330
    %v363 = vunpack.c.l.b16 %v331
    %v364 = vunpack.c.l.b16 %v332
    %v365 = vunpack.c.l.b16 %v333
    %v366 = vunpack.c.l.b16 %v334
    %v367 = vunpack.c.l.b16 %v335
    %v368 = vunpack.c.l.b16 %v336
    %v369 = vunpack.c.l.b16 %v337
    %v370 = vunpack.c.l.b16 %v338
    %v371 = vunpack.c.l.b16 %v339
    %v372 = vunpack.c.l.b16 %v340
    %v373 = vunpack.c.l.b16 %v341
    %v374 = vpack.c.b16 %v359, %v358
    %v375 = vpack.c.b16 %v361, %v360
    %v376 = vpack.c.b16 %v363, %v362
    %v377 = vpack.c.b16 %v365, %v364
    %v378 = vpack.c.b16 %v367, %v366
    %v379 = vpack.c.b16 %v369, %v368
    %v380 = vpack.c.b16 %v371, %v370
    %v381 = vpack.c.b16 %v373, %v372
    %390 = vmatpush.bf16.msra.mxu0 %v381
    %391 = vmatpush.bf16.msra.mxu0 %v380
    %392 = vmatpush.bf16.msra.mxu0 %v379
    %393 = vmatpush.bf16.msra.mxu0 %v378
    %394 = vmatpush.bf16.msra.mxu0 %v377
    %395 = vmatpush.bf16.msra.mxu0 %v376
    %396 = vmatpush.bf16.msra.mxu0 %v375
    %397 = vmatpush.bf16.msra.mxu0 %v374
    %398 = vmatmul.bf16.gmra.mxu0 %v325
    %v399 = vpop.f32.mrf.mxu0
    %v400 = vadd.f32 0.0, %v399
    %v401 = vpop.f32.mrf.mxu0
    %402 = vdwg.mxu0
    %403 = vst [vmem:[#allocation7] sm:$0xff] %v400
    // Predicated region
    $region30: #{tpu_custom_call.1} parent=1 // pred_check
      _
    $region31: #{tpu_custom_call.1} parent=1 // pred_check_branch
      %405 = sbr.rel (0) target = $region33
    $region32: #{tpu_custom_call.1} parent=1 // pred_region
      %407 = vsyncadd [#allocation4], 0
      %s409 = sshll.u32 [#allocation7], 4
      %s410 = int_to_ptr.vmem [resolvable:$true] %s409
      %s411 = sshll.u32 %s5, 4
      %s412 = int_to_ptr.hbm [resolvable:$true] %s411
      %414 = dma.vmem_to_hbm [thread:$0]  %s410, 128, %s412, [#allocation4]
    $region33: #{tpu_custom_call.1} parent=1 // pred_fallthru
      _
    // Predicated region
    $region34: #{tpu_custom_call.1} parent=1 // pred_check
      _
    $region35: #{tpu_custom_call.1} parent=1 // pred_check_branch
      %416 = sbr.rel (0) target = $region37
    $region36: #{tpu_custom_call.1} parent=1 // pred_region
      %418 = dma.done [#allocation4], 128
    $region37: #{tpu_custom_call.1} parent=1 // pred_fallthru
      _
    %419 = vsyncpa [#allocation3], 1
    %420 = vsyncpa [#allocation6], 1
    %421 = vsyncpa [#allocation4], 1

</llo_original>
